<compile_context>
chip_gen: v5e
topology: v5e:2x2
jax: 0.10.0
libtpu: 0.0.40
codegen_flags: <defaults>
</compile_context>

<pallas_src>
import jax
import jax.numpy as jnp
from jax.experimental import pallas as pl
from jax.experimental.pallas import tpu as pltpu


def _round_up(x, m):
    return (x + m - 1) // m * m


def _cdiv(a, b):
    return (a + b - 1) // b


def _critic_kernel(xt_ref, w1_ref, b1_ref, w2_ref, b2_ref, w3_ref, b3_ref, o_ref):
    # Feature-major: xt block is [in_dims, tile_b] (batch along lanes).
    # Layer 1: h1 = relu(W1 @ x^T + b1), [64, in] @ [in, tile_b] -> [64, tile_b].
    w1 = w1_ref[...]
    h1 = jnp.dot(w1, xt_ref[...], preferred_element_type=jnp.float32)
    h1 = jnp.maximum(h1 + b1_ref[...], 0.0)          # bias/ReLU in f32 (VPU)

    # Layer 2: h2 = relu(W2 @ h1 + b2), [64, 64] @ [64, tile_b] -> [64, tile_b].
    w2 = w2_ref[...]
    h2 = jnp.dot(w2, h1.astype(w2.dtype), preferred_element_type=jnp.float32)
    h2 = jnp.maximum(h2 + b2_ref[...], 0.0)

    # Value head: v = W3 @ h2 + b3, [1, 64] @ [64, tile_b] -> [1, tile_b].
    # One LHS push per 256-lane N-tile; output is lane-dense by construction.
    w3 = w3_ref[...]
    v = jnp.dot(w3, h2.astype(w3.dtype), preferred_element_type=jnp.float32)
    o_ref[...] = (v + b3_ref[...]).astype(o_ref.dtype)


def critic_forward(state, params, *, tile_b_max=8192, use_bf16=True):
    """state: [B, in_dims] f32 -> value: [B, 1] f32."""
    w1, b1, w2, b2, w3, b3 = params
    B, in_dims = state.shape
    hidden = w1.shape[0]

    compute_dtype = jnp.bfloat16 if use_bf16 else jnp.float32

    # Feature-major input (batch on lanes). Transpose + cast once in the wrapper.
    xt = state.T.astype(compute_dtype)                 # [in_dims, B]
    w1c = w1.astype(compute_dtype)
    w2c = w2.astype(compute_dtype)
    w3c = w3.astype(compute_dtype)

    # tile_b is the lane dim -> multiple of 128. Pick the smallest tile count
    # that respects tile_b_max, then even out the tiles so the trailing tile is
    # not nearly empty (e.g. B=2050 no longer pads a whole dead 2046-row tile).
    n_tiles = max(1, _cdiv(B, tile_b_max))
    tile_b = _round_up(_cdiv(B, n_tiles), 128)
    b_pad = _round_up(B, tile_b)
    n_tiles = b_pad // tile_b
    if b_pad != B:
        xt = jnp.pad(xt, ((0, 0), (0, b_pad - B)))

    def resident(a):  # same block every grid step -> stays in VMEM
        return pl.BlockSpec(a.shape, lambda i: (0, 0))

    nbytes = lambda a: int(a.size) * a.dtype.itemsize
    flops = 2 * b_pad * (in_dims * hidden + hidden * hidden + hidden)
    bytes_accessed = (
        nbytes(xt) + b_pad * 4
        + sum(nbytes(p) for p in (w1c, b1, w2c, b2, w3c, b3))
    )

    out = pl.pallas_call(
        _critic_kernel,
        out_shape=jax.ShapeDtypeStruct((1, b_pad), jnp.float32),
        grid=(n_tiles,),
        in_specs=[
            pl.BlockSpec((in_dims, tile_b), lambda i: (0, i)),  # streamed per tile
            resident(w1c), resident(b1),
            resident(w2c), resident(b2),
            resident(w3c), resident(b3),
        ],
        out_specs=pl.BlockSpec((1, tile_b), lambda i: (0, i)),  # lane-dense store
        compiler_params=pltpu.CompilerParams(
            # Independent batch tiles: shard across v7x's two TensorCores.
            # (If a trace shows one core idle, pltpu.CORE_PARALLEL is the next step.)
            dimension_semantics=("parallel",),
        ),
        cost_estimate=pl.CostEstimate(
            flops=int(flops), transcendentals=0, bytes_accessed=int(bytes_accessed)
        ),
    )(xt, w1c, b1, w2c, b2, w3c, b3)

    return out[:, :B].T  # [B, 1]


def init_params(key, in_dims, hidden=64):
    """Deterministic init mirroring nn.Linear (PyTorch layout: W [out, in]).

    Biases are stored as columns ([out, 1]) so they broadcast along lanes in the
    feature-major kernel.
    """
    k1, k2, k3, k4, k5, k6 = jax.random.split(key, 6)

    def lin(kw, kb, fan_in, out_dim):
        bound = 1.0 / jnp.sqrt(jnp.float32(fan_in))
        w = jax.random.uniform(kw, (out_dim, fan_in), jnp.float32, -bound, bound)
        b = jax.random.uniform(kb, (out_dim, 1), jnp.float32, -bound, bound)
        return w, b

    w1, b1 = lin(k1, k2, in_dims, hidden)
    w2, b2 = lin(k3, k4, hidden, hidden)
    w3, b3 = lin(k5, k6, hidden, 1)
    return (w1, b1, w2, b2, w3, b3)


def _reference(state, params):
    w1, b1, w2, b2, w3, b3 = params
    h = jnp.maximum(state @ w1.T + b1.T, 0.0)
    h = jnp.maximum(h @ w2.T + b2.T, 0.0)
    return h @ w3.T + b3.T


# TODO(synk): the Adam optimizer / training step of CriticNet has no Pallas
# forward-pass equivalent here; this kernel implements forward() only.

if __name__ == "__main__":
    key = jax.random.PRNGKey(0)
    k_params, k_state, k_state2 = jax.random.split(key, 3)

    batch, in_dims = 8, 32
    params = init_params(k_params, in_dims)

    # Small single-tile case (bf16 matmul operands, f32 accumulation: default).
    state = jax.random.normal(k_state, (batch, in_dims), dtype=jnp.float32)
    ref = _reference(state, params)
    value = jax.block_until_ready(critic_forward(state, params))
    assert value.shape == (batch, 1)
    assert jnp.allclose(value, ref, atol=5e-2, rtol=5e-2)

    # Exact f32 path (opt-out of bf16), tight tolerance.
    value_f32 = jax.block_until_ready(critic_forward(state, params, use_bf16=False))
    assert jnp.allclose(value_f32, ref, atol=5e-5, rtol=5e-5)

    # Multi-tile grid + ragged batch: tile_b_max forced small to exercise the
    # balanced-tile sizing and trailing-tile padding path.
    batch2 = 2050
    state2 = jax.random.normal(k_state2, (batch2, in_dims), dtype=jnp.float32)
    ref2 = _reference(state2, params)
    value2 = jax.block_until_ready(
        critic_forward(state2, params, tile_b_max=1024, use_bf16=False)
    )
    assert value2.shape == (batch2, 1)
    assert jnp.allclose(value2, ref2, atol=5e-5, rtol=5e-5)

    value2_bf16 = jax.block_until_ready(
        critic_forward(state2, params, tile_b_max=1024)
    )
    assert value2_bf16.shape == (batch2, 1)
    assert jnp.allclose(value2_bf16, ref2, atol=5e-2, rtol=5e-2)

    print("KERNEL_OK")
</pallas_src>

<mosaic_0001>
module attributes {stable_mosaic.version = 11 : i64} {
  func.func @_critic_kernel(%arg0: i32, %arg1: memref<32x128xbf16, #tpu.memory_space<vmem>>, %arg2: memref<64x32xbf16, #tpu.memory_space<vmem>>, %arg3: memref<64x1xf32, #tpu.memory_space<vmem>>, %arg4: memref<64x64xbf16, #tpu.memory_space<vmem>>, %arg5: memref<64x1xf32, #tpu.memory_space<vmem>>, %arg6: memref<1x64xbf16, #tpu.memory_space<vmem>>, %arg7: memref<1x1xf32, #tpu.memory_space<vmem>>, %arg8: memref<1x128xf32, #tpu.memory_space<vmem>>) attributes {dimension_semantics = [#tpu.dimension_semantics<parallel>], iteration_bounds = array<i64: 1>, scalar_prefetch = 0 : i64, scratch_operands = 0 : i64, tpu.core_type = #tpu.core_type<tc>, window_params = [{transform_indices = @transform_0, window_bounds = array<i64: 32, 128>}, {pipeline_mode = #tpu.pipeline_mode<synchronous>, transform_indices = @transform_1, window_bounds = array<i64: 64, 32>}, {pipeline_mode = #tpu.pipeline_mode<synchronous>, transform_indices = @transform_2, window_bounds = array<i64: 64, 1>}, {pipeline_mode = #tpu.pipeline_mode<synchronous>, transform_indices = @transform_3, window_bounds = array<i64: 64, 64>}, {pipeline_mode = #tpu.pipeline_mode<synchronous>, transform_indices = @transform_4, window_bounds = array<i64: 64, 1>}, {pipeline_mode = #tpu.pipeline_mode<synchronous>, transform_indices = @transform_5, window_bounds = array<i64: 1, 64>}, {pipeline_mode = #tpu.pipeline_mode<synchronous>, transform_indices = @transform_6, window_bounds = array<i64: 1, 1>}, {transform_indices = @transform_7, window_bounds = array<i64: 1, 128>}]} {
    %c0 = arith.constant 0 : index
    %c0_0 = arith.constant 0 : index
    %0 = vector.load %arg2[%c0, %c0_0] : memref<64x32xbf16, #tpu.memory_space<vmem>>, vector<64x32xbf16>
    %c0_1 = arith.constant 0 : index
    %c0_2 = arith.constant 0 : index
    %1 = vector.load %arg1[%c0_1, %c0_2] : memref<32x128xbf16, #tpu.memory_space<vmem>>, vector<32x128xbf16>
    %cst = arith.constant dense<0.000000e+00> : vector<64x128xf32>
    %2 = tpu.matmul %0, %1, %cst {dimension_numbers = #tpu.dot_dimension_numbers<[1], [0], [0], [1], [0, 0, 1, 1], [], []>} : vector<64x32xbf16>, vector<32x128xbf16>, vector<64x128xf32> -> vector<64x128xf32>
    %c0_3 = arith.constant 0 : index
    %c0_4 = arith.constant 0 : index
    %3 = vector.load %arg3[%c0_3, %c0_4] : memref<64x1xf32, #tpu.memory_space<vmem>>, vector<64x1xf32>
    %4 = vector.broadcast %3 : vector<64x1xf32> to vector<64x128xf32>
    %5 = arith.addf %2, %4 : vector<64x128xf32>
    %cst_5 = arith.constant 0.000000e+00 : f32
    %6 = vector.broadcast %cst_5 : f32 to vector<64x128xf32>
    %7 = arith.maximumf %5, %6 : vector<64x128xf32>
    %c0_6 = arith.constant 0 : index
    %c0_7 = arith.constant 0 : index
    %8 = vector.load %arg4[%c0_6, %c0_7] : memref<64x64xbf16, #tpu.memory_space<vmem>>, vector<64x64xbf16>
    %9 = arith.truncf %7 : vector<64x128xf32> to vector<64x128xbf16>
    %cst_8 = arith.constant dense<0.000000e+00> : vector<64x128xf32>
    %10 = tpu.matmul %8, %9, %cst_8 {dimension_numbers = #tpu.dot_dimension_numbers<[1], [0], [0], [1], [0, 0, 1, 1], [], []>} : vector<64x64xbf16>, vector<64x128xbf16>, vector<64x128xf32> -> vector<64x128xf32>
    %c0_9 = arith.constant 0 : index
    %c0_10 = arith.constant 0 : index
    %11 = vector.load %arg5[%c0_9, %c0_10] : memref<64x1xf32, #tpu.memory_space<vmem>>, vector<64x1xf32>
    %12 = vector.broadcast %11 : vector<64x1xf32> to vector<64x128xf32>
    %13 = arith.addf %10, %12 : vector<64x128xf32>
    %cst_11 = arith.constant 0.000000e+00 : f32
    %14 = vector.broadcast %cst_11 : f32 to vector<64x128xf32>
    %15 = arith.maximumf %13, %14 : vector<64x128xf32>
    %c0_12 = arith.constant 0 : index
    %c0_13 = arith.constant 0 : index
    %16 = vector.load %arg6[%c0_12, %c0_13] : memref<1x64xbf16, #tpu.memory_space<vmem>>, vector<1x64xbf16>
    %17 = arith.truncf %15 : vector<64x128xf32> to vector<64x128xbf16>
    %cst_14 = arith.constant dense<0.000000e+00> : vector<1x128xf32>
    %18 = tpu.matmul %16, %17, %cst_14 {dimension_numbers = #tpu.dot_dimension_numbers<[1], [0], [0], [1], [0, 0, 1, 1], [], []>} : vector<1x64xbf16>, vector<64x128xbf16>, vector<1x128xf32> -> vector<1x128xf32>
    %c0_15 = arith.constant 0 : index
    %c0_16 = arith.constant 0 : index
    %19 = vector.load %arg7[%c0_15, %c0_16] : memref<1x1xf32, #tpu.memory_space<vmem>>, vector<1x1xf32>
    %20 = vector.broadcast %19 : vector<1x1xf32> to vector<1x128xf32>
    %21 = arith.addf %18, %20 : vector<1x128xf32>
    %c0_17 = arith.constant 0 : index
    %c0_18 = arith.constant 0 : index
    %22 = vector.load %arg8[%c0_17, %c0_18] : memref<1x128xf32, #tpu.memory_space<vmem>>, vector<1x128xf32>
    tpu.vector_store %arg8[%c0_17, %c0_18], %21 {strides = array<i32>} : memref<1x128xf32, #tpu.memory_space<vmem>>, vector<1x128xf32>,
    return
  }
  func.func @transform_0(%arg0: i32) -> (i32, i32) {
    %c0_i32 = arith.constant 0 : i32
    %c0_i32_0 = arith.constant 0 : i32
    return %c0_i32, %arg0 : i32, i32
  }
  func.func @transform_1(%arg0: i32) -> (i32, i32) {
    %c0_i32 = arith.constant 0 : i32
    %c0_i32_0 = arith.constant 0 : i32
    %c0_i32_1 = arith.constant 0 : i32
    return %c0_i32, %c0_i32_0 : i32, i32
  }
  func.func @transform_2(%arg0: i32) -> (i32, i32) {
    %c0_i32 = arith.constant 0 : i32
    %c0_i32_0 = arith.constant 0 : i32
    %c0_i32_1 = arith.constant 0 : i32
    return %c0_i32, %c0_i32_0 : i32, i32
  }
  func.func @transform_3(%arg0: i32) -> (i32, i32) {
    %c0_i32 = arith.constant 0 : i32
    %c0_i32_0 = arith.constant 0 : i32
    %c0_i32_1 = arith.constant 0 : i32
    return %c0_i32, %c0_i32_0 : i32, i32
  }
  func.func @transform_4(%arg0: i32) -> (i32, i32) {
    %c0_i32 = arith.constant 0 : i32
    %c0_i32_0 = arith.constant 0 : i32
    %c0_i32_1 = arith.constant 0 : i32
    return %c0_i32, %c0_i32_0 : i32, i32
  }
  func.func @transform_5(%arg0: i32) -> (i32, i32) {
    %c0_i32 = arith.constant 0 : i32
    %c0_i32_0 = arith.constant 0 : i32
    %c0_i32_1 = arith.constant 0 : i32
    return %c0_i32, %c0_i32_0 : i32, i32
  }
  func.func @transform_6(%arg0: i32) -> (i32, i32) {
    %c0_i32 = arith.constant 0 : i32
    %c0_i32_0 = arith.constant 0 : i32
    %c0_i32_1 = arith.constant 0 : i32
    return %c0_i32, %c0_i32_0 : i32, i32
  }
  func.func @transform_7(%arg0: i32) -> (i32, i32) {
    %c0_i32 = arith.constant 0 : i32
    %c0_i32_0 = arith.constant 0 : i32
    return %c0_i32, %arg0 : i32, i32
  }
}

</mosaic_0001>

<llo_original>
// kernel: tpu_custom_call.1
$region0: #{tpu_custom_call.1}
  #allocation0 [shape = 'u32[]', space=smem, size = 0x4, offset = 0x4, fixed_abs, tag = 'smem constant byte address 0x4 - core index']
  #allocation1 [shape = 'u32[72,128]{1,0:T(1,128)}', space=vmem, size = 0x9000, scoped, tag = 'internal scratch']
  #allocation2 [shape = 'f32[1,1]{1,0:T(1,128)S(1)}', space=vmem, size = 0x200, scoped, tag = 'scoped memory for tpu_custom_call.1']
  %s0 = inlined_call_operand.vmem [shape: bf16[32,128], index: 0, kind: input, shape index: {}]
  %s1 = inlined_call_operand.vmem [shape: bf16[64,32], index: 1, kind: input, shape index: {}]
  %s2 = inlined_call_operand.vmem [shape: f32[64,1], index: 2, kind: input, shape index: {}]
  %s3 = inlined_call_operand.vmem [shape: bf16[64,64], index: 3, kind: input, shape index: {}]
  %s4 = inlined_call_operand.vmem [shape: f32[64,1], index: 4, kind: input, shape index: {}]
  %s5 = inlined_call_operand.vmem [shape: bf16[1,64], index: 5, kind: input, shape index: {}]
  %s6 = inlined_call_operand.<no memory space> [shape: f32[1,1], index: 6, kind: input, shape index: {}]
  %s7 = inlined_call_operand.hbm [shape: f32[1,128], index: 7, kind: output, shape index: {}]
  %s8 = sld [smem:[#allocation0]]
  $region38: #{tpu_custom_call.1} parent=0
    _
  %s10 = ssub.s32 1, %s8
  %s11 = scalar_select 0, %s10, %s8
  %v12 = vstv %s6
  %13 = vst [vmem:[#allocation2] sm:$0x1] %v12
  $region1: #{tpu_custom_call.1} parent=0
    #allocation3 [shape = 'u8[512]{0}', space=vmem, size = 0x400, scoped, tag = 'output window, operand 0, single buffered']
    #allocation4 [shape = 's32[1]{0}', space=sflag, size = 0x4, scoped, tag = 'scoped memory for tpu_custom_call.1']
    %14 = vsyncpa [#allocation4], 0
    // Predicated region
    $region2: #{tpu_custom_call.1} parent=1 // pred_check
      _
    $region3: #{tpu_custom_call.1} parent=1 // pred_check_branch
      %16 = sbr.rel (0) target = $region5
    $region4: #{tpu_custom_call.1} parent=1 // pred_region
      _
    $region5: #{tpu_custom_call.1} parent=1 // pred_fallthru
      _
    // Predicated region
    $region6: #{tpu_custom_call.1} parent=1 // pred_check
      _
    $region7: #{tpu_custom_call.1} parent=1 // pred_check_branch
      %18 = sbr.rel (0) target = $region9
    $region8: #{tpu_custom_call.1} parent=1 // pred_region
      _
    $region9: #{tpu_custom_call.1} parent=1 // pred_fallthru
      _
    // Predicated region
    $region10: #{tpu_custom_call.1} parent=1 // pred_check
      _
    $region11: #{tpu_custom_call.1} parent=1 // pred_check_branch
      %20 = sbr.rel (0) target = $region13
    $region12: #{tpu_custom_call.1} parent=1 // pred_region
      _
    $region13: #{tpu_custom_call.1} parent=1 // pred_fallthru
      _
    // Predicated region
    $region14: #{tpu_custom_call.1} parent=1 // pred_check
      _
    $region15: #{tpu_custom_call.1} parent=1 // pred_check_branch
      %22 = sbr.rel (0) target = $region17
    $region16: #{tpu_custom_call.1} parent=1 // pred_region
      _
    $region17: #{tpu_custom_call.1} parent=1 // pred_fallthru
      _
    // Predicated region
    $region18: #{tpu_custom_call.1} parent=1 // pred_check
      _
    $region19: #{tpu_custom_call.1} parent=1 // pred_check_branch
      %24 = sbr.rel (0) target = $region21
    $region20: #{tpu_custom_call.1} parent=1 // pred_region
      _
    $region21: #{tpu_custom_call.1} parent=1 // pred_fallthru
      _
    // Predicated region
    $region22: #{tpu_custom_call.1} parent=1 // pred_check
      _
    $region23: #{tpu_custom_call.1} parent=1 // pred_check_branch
      %26 = sbr.rel (0) target = $region25
    $region24: #{tpu_custom_call.1} parent=1 // pred_region
      _
    $region25: #{tpu_custom_call.1} parent=1 // pred_fallthru
      _
    // Predicated region
    $region26: #{tpu_custom_call.1} parent=1 // pred_check
      _
    $region27: #{tpu_custom_call.1} parent=1 // pred_check_branch
      %28 = sbr.rel (0) target = $region29
    $region28: #{tpu_custom_call.1} parent=1 // pred_region
      _
    $region29: #{tpu_custom_call.1} parent=1 // pred_fallthru
      _
    %v30 = vld [vmem:[%s1] sm:$0xf]
    %v31 = vld [vmem:[%s1 + $0x4] sm:$0xf]
    %v32 = vld [vmem:[%s1 + $0x8] sm:$0xf]
    %v33 = vld [vmem:[%s1 + $0xc] sm:$0xf]
    %v34 = vld [vmem:[%s1 + $0x10] sm:$0xf]
    %v35 = vld [vmem:[%s1 + $0x14] sm:$0xf]
    %v36 = vld [vmem:[%s1 + $0x18] sm:$0xf]
    %v37 = vld [vmem:[%s1 + $0x1c] sm:$0xf]
    %v38 = vld [vmem:[%s0] sm:$0xf]
    %v39 = vld [vmem:[%s0 + $0x4] sm:$0xf]
    %v40 = vld [vmem:[%s0 + $0x8] sm:$0xf]
    %v41 = vld [vmem:[%s0 + $0xc] sm:$0xf]
    %v42 = vld [vmem:[%s2] sm:$0xff]
    %v43 = vld [vmem:[%s2 + $0x8] sm:$0xff]
    %v44 = vld [vmem:[%s2 + $0x10] sm:$0xff]
    %v45 = vld [vmem:[%s2 + $0x18] sm:$0xff]
    %v46 = vld [vmem:[%s2 + $0x20] sm:$0xff]
    %v47 = vld [vmem:[%s2 + $0x28] sm:$0xff]
    %v48 = vld [vmem:[%s2 + $0x30] sm:$0xff]
    %v49 = vld [vmem:[%s2 + $0x38] sm:$0xff]
    %51 = vset.pattern.permute.xlu0 0
    %52 = vperm.xlu0 %51, %v42
    %v53 = vpop.permute.xlu0 %52
    %56 = vset.pattern.permute.xlu0 0
    %57 = vperm.xlu0 %56, %v43
    %v58 = vpop.permute.xlu0 %57
    %61 = vset.pattern.permute.xlu0 0
    %62 = vperm.xlu0 %61, %v44
    %v63 = vpop.permute.xlu0 %62
    %66 = vset.pattern.permute.xlu0 0
    %67 = vperm.xlu0 %66, %v45
    %v68 = vpop.permute.xlu0 %67
    %71 = vset.pattern.permute.xlu0 0
    %72 = vperm.xlu0 %71, %v46
    %v73 = vpop.permute.xlu0 %72
    %76 = vset.pattern.permute.xlu0 0
    %77 = vperm.xlu0 %76, %v47
    %v78 = vpop.permute.xlu0 %77
    %81 = vset.pattern.permute.xlu0 0
    %82 = vperm.xlu0 %81, %v48
    %v83 = vpop.permute.xlu0 %82
    %86 = vset.pattern.permute.xlu0 0
    %87 = vperm.xlu0 %86, %v49
    %v88 = vpop.permute.xlu0 %87
    %v98 = vunpack.c.l.b16 %v30
    %v99 = vunpack.c.l.b16 %v31
    %v100 = vunpack.c.l.b16 %v32
    %v101 = vunpack.c.l.b16 %v33
    %v102 = vunpack.c.l.b16 %v34
    %v103 = vunpack.c.l.b16 %v35
    %v104 = vunpack.c.l.b16 %v36
    %v105 = vunpack.c.l.b16 %v37
    %v106 = vpack.c.b16 %v99, %v98
    %v107 = vpack.c.b16 %v101, %v100
    %v108 = vpack.c.b16 %v103, %v102
    %v109 = vpack.c.b16 %v105, %v104
    %v114 = vunpack.c.l.b16 %v38
    %v115 = vunpack.c.l.b16 %v39
    %v116 = vunpack.c.l.b16 %v40
    %v117 = vunpack.c.l.b16 %v41
    %v118 = vpack.c.b16 %v115, %v114
    %v119 = vpack.c.b16 %v117, %v116
    %vm122 = vcmask 261120
    %v124 = vsel %vm122, %v106, 0
    %v127 = vsel %vm122, %v107, 0
    %v130 = vsel %vm122, %v108, 0
    %v133 = vsel %vm122, %v109, 0
    %135 = vmatpush.bf16.msra.mxu0 0
    %136 = vmatpush.bf16.msra.mxu0 0
    %137 = vmatpush.bf16.msra.mxu0 0
    %138 = vmatpush.bf16.msra.mxu0 0
    %139 = vmatpush.bf16.msra.mxu0 0
    %140 = vmatpush.bf16.msra.mxu0 0
    %141 = vmatpush.bf16.msra.mxu0 %v119
    %142 = vmatpush.bf16.msra.mxu0 %v118
    %143 = vmatmul.bf16.gmra.mxu0 %v124
    %v144 = vpop.f32.mrf.mxu0
    %v145 = vadd.f32 %v53, %v144
    %v146 = vpop.f32.mrf.mxu0
    %v147 = vadd.f32 %v58, %v146
    %148 = vmatmul.bf16.gmra.mxu0 %v127
    %v149 = vpop.f32.mrf.mxu0
    %v150 = vadd.f32 %v63, %v149
    %v151 = vpop.f32.mrf.mxu0
    %v152 = vadd.f32 %v68, %v151
    %153 = vmatmul.bf16.gmra.mxu0 %v130
    %v154 = vpop.f32.mrf.mxu0
    %v155 = vadd.f32 %v73, %v154
    %v156 = vpop.f32.mrf.mxu0
    %v157 = vadd.f32 %v78, %v156
    %158 = vmatmul.bf16.gmra.mxu0 %v133
    %v159 = vpop.f32.mrf.mxu0
    %v160 = vadd.f32 %v83, %v159
    %v161 = vpop.f32.mrf.mxu0
    %v162 = vadd.f32 %v88, %v161
    %163 = vdwg.mxu0
    %v164 = vmax.f32 %v145, 0.0
    %v165 = vmax.f32 %v147, 0.0
    %v166 = vmax.f32 %v150, 0.0
    %v167 = vmax.f32 %v152, 0.0
    %v168 = vmax.f32 %v155, 0.0
    %v169 = vmax.f32 %v157, 0.0
    %v170 = vmax.f32 %v160, 0.0
    %v171 = vmax.f32 %v162, 0.0
    %v172 = vld [vmem:[%s3] sm:$0xf]
    %v173 = vld [vmem:[%s3 + $0x4] sm:$0xf]
    %v174 = vld [vmem:[%s3 + $0x8] sm:$0xf]
    %v175 = vld [vmem:[%s3 + $0xc] sm:$0xf]
    %v176 = vld [vmem:[%s3 + $0x10] sm:$0xf]
    %v177 = vld [vmem:[%s3 + $0x14] sm:$0xf]
    %v178 = vld [vmem:[%s3 + $0x18] sm:$0xf]
    %v179 = vld [vmem:[%s3 + $0x1c] sm:$0xf]
    %v180 = vpack.c.bf16 %v165, %v164
    %v181 = vpack.c.bf16 %v167, %v166
    %v182 = vpack.c.bf16 %v169, %v168
    %v183 = vpack.c.bf16 %v171, %v170
    %v184 = vld [vmem:[%s4] sm:$0xff]
    %v185 = vld [vmem:[%s4 + $0x8] sm:$0xff]
    %v186 = vld [vmem:[%s4 + $0x10] sm:$0xff]
    %v187 = vld [vmem:[%s4 + $0x18] sm:$0xff]
    %v188 = vld [vmem:[%s4 + $0x20] sm:$0xff]
    %v189 = vld [vmem:[%s4 + $0x28] sm:$0xff]
    %v190 = vld [vmem:[%s4 + $0x30] sm:$0xff]
    %v191 = vld [vmem:[%s4 + $0x38] sm:$0xff]
    %193 = vset.pattern.permute.xlu0 0
    %194 = vperm.xlu0 %193, %v184
    %v195 = vpop.permute.xlu0 %194
    %198 = vset.pattern.permute.xlu0 0
    %199 = vperm.xlu0 %198, %v185
    %v200 = vpop.permute.xlu0 %199
    %203 = vset.pattern.permute.xlu0 0
    %204 = vperm.xlu0 %203, %v186
    %v205 = vpop.permute.xlu0 %204
    %208 = vset.pattern.permute.xlu0 0
    %209 = vperm.xlu0 %208, %v187
    %v210 = vpop.permute.xlu0 %209
    %213 = vset.pattern.permute.xlu0 0
    %214 = vperm.xlu0 %213, %v188
    %v215 = vpop.permute.xlu0 %214
    %218 = vset.pattern.permute.xlu0 0
    %219 = vperm.xlu0 %218, %v189
    %v220 = vpop.permute.xlu0 %219
    %223 = vset.pattern.permute.xlu0 0
    %224 = vperm.xlu0 %223, %v190
    %v225 = vpop.permute.xlu0 %224
    %228 = vset.pattern.permute.xlu0 0
    %229 = vperm.xlu0 %228, %v191
    %v230 = vpop.permute.xlu0 %229
    %v240 = vunpack.c.l.b16 %v172
    %v241 = vunpack.c.l.b16 %v173
    %v242 = vunpack.c.l.b16 %v174
    %v243 = vunpack.c.l.b16 %v175
    %v244 = vunpack.c.l.b16 %v176
    %v245 = vunpack.c.l.b16 %v177
    %v246 = vunpack.c.l.b16 %v178
    %v247 = vunpack.c.l.b16 %v179
    %v248 = vpack.c.b16 %v241, %v240
    %v249 = vpack.c.b16 %v243, %v242
    %v250 = vpack.c.b16 %v245, %v244
    %v251 = vpack.c.b16 %v247, %v246
    %vm252 = vcmask 523264
    %v254 = vsel %vm252, %v248, 0
    %v257 = vsel %vm252, %v249, 0
    %v260 = vsel %vm252, %v250, 0
    %v263 = vsel %vm252, %v251, 0
    %265 = vmatpush.bf16.msra.mxu0 0
    %266 = vmatpush.bf16.msra.mxu0 0
    %267 = vmatpush.bf16.msra.mxu0 0
    %268 = vmatpush.bf16.msra.mxu0 0
    %269 = vmatpush.bf16.msra.mxu0 %v183
    %270 = vmatpush.bf16.msra.mxu0 %v182
    %271 = vmatpush.bf16.msra.mxu0 %v181
    %272 = vmatpush.bf16.msra.mxu0 %v180
    %273 = vmatmul.bf16.gmra.mxu0 %v254
    %v274 = vpop.f32.mrf.mxu0
    %v275 = vadd.f32 %v195, %v274
    %v276 = vpop.f32.mrf.mxu0
    %v277 = vadd.f32 %v200, %v276
    %278 = vmatmul.bf16.gmra.mxu0 %v257
    %v279 = vpop.f32.mrf.mxu0
    %v280 = vadd.f32 %v205, %v279
    %v281 = vpop.f32.mrf.mxu0
    %v282 = vadd.f32 %v210, %v281
    %283 = vmatmul.bf16.gmra.mxu0 %v260
    %v284 = vpop.f32.mrf.mxu0
    %v285 = vadd.f32 %v215, %v284
    %v286 = vpop.f32.mrf.mxu0
    %v287 = vadd.f32 %v220, %v286
    %288 = vmatmul.bf16.gmra.mxu0 %v263
    %v289 = vpop.f32.mrf.mxu0
    %v290 = vadd.f32 %v225, %v289
    %v291 = vpop.f32.mrf.mxu0
    %v292 = vadd.f32 %v230, %v291
    %293 = vdwg.mxu0
    %v294 = vmax.f32 %v275, 0.0
    %v295 = vmax.f32 %v277, 0.0
    %v296 = vmax.f32 %v280, 0.0
    %v297 = vmax.f32 %v282, 0.0
    %v298 = vmax.f32 %v285, 0.0
    %v299 = vmax.f32 %v287, 0.0
    %v300 = vmax.f32 %v290, 0.0
    %v301 = vmax.f32 %v292, 0.0
    %v302 = vld [vmem:[%s5] sm:$0x1]
    %v303 = vpack.c.bf16 %v295, %v294
    %v304 = vpack.c.bf16 %v297, %v296
    %v305 = vpack.c.bf16 %v299, %v298
    %v306 = vpack.c.bf16 %v301, %v300
    %v307 = vld [vmem:[#allocation2] sm:$0x1]
    %309 = vset.pattern.permute.xlu0 0
    %310 = vperm.xlu0 %309, %v307
    %v311 = vpop.permute.xlu0 %310
    %v313 = vperm.slane %v311, 0
    %v315 = vsel %vm252, %v302, 0
    %317 = vmatpush.bf16.msra.mxu0 0
    %318 = vmatpush.bf16.msra.mxu0 0
    %319 = vmatpush.bf16.msra.mxu0 0
    %320 = vmatpush.bf16.msra.mxu0 0
    %321 = vmatpush.bf16.msra.mxu0 %v306
    %322 = vmatpush.bf16.msra.mxu0 %v305
    %323 = vmatpush.bf16.msra.mxu0 %v304
    %324 = vmatpush.bf16.msra.mxu0 %v303
    %325 = vmatmul.bf16.gmra.mxu0 %v315
    %v326 = vpop.f32.mrf.mxu0
    %v327 = vadd.f32 %v313, %v326
    %v328 = vpop.f32.mrf.mxu0
    %329 = vdwg.mxu0
    %330 = vst [vmem:[#allocation3] sm:$0x1] %v327
    // Predicated region
    $region30: #{tpu_custom_call.1} parent=1 // pred_check
      _
    $region31: #{tpu_custom_call.1} parent=1 // pred_check_branch
      %332 = sbr.rel (0) target = $region33
    $region32: #{tpu_custom_call.1} parent=1 // pred_region
      %334 = vsyncadd [#allocation4], 0
      %s336 = sshll.u32 [#allocation3], 4
      %s337 = int_to_ptr.vmem [resolvable:$true] %s336
      %s338 = sshll.u32 %s7, 4
      %s339 = int_to_ptr.hbm [resolvable:$true] %s338
      %341 = dma.vmem_to_hbm [thread:$0]  %s337, 16, %s339, [#allocation4]
    $region33: #{tpu_custom_call.1} parent=1 // pred_fallthru
      _
    // Predicated region
    $region34: #{tpu_custom_call.1} parent=1 // pred_check
      _
    $region35: #{tpu_custom_call.1} parent=1 // pred_check_branch
      %343 = sbr.rel (0) target = $region37
    $region36: #{tpu_custom_call.1} parent=1 // pred_region
      %345 = dma.done [#allocation4], 16
    $region37: #{tpu_custom_call.1} parent=1 // pred_fallthru
      _
    %346 = vsyncpa [#allocation4], 1

</llo_original>
